<compile_context>
chip_gen: v6e
topology: v6e:2x2x1
jax: 0.10.0
libtpu: 0.0.40
codegen_flags: <defaults>
</compile_context>

<pallas_src>
import math
from functools import partial

import jax
import jax.numpy as jnp
from jax.experimental import pallas as pl
from jax.experimental.pallas import tpu as pltpu

LOG_STD_MIN = -20.0
LOG_STD_MAX = 2.0
LOG2 = math.log(2.0)
HALF_LOG_2PI = 0.5 * math.log(2.0 * math.pi)
MAX_B_TILE = 2048      # large batch tiles; few grid steps


def _round_up(x, m):
    return (x + m - 1) // m * m


def actor_kernel(x_ref, w1_ref, w2_ref, wh_ref, b1_ref, b2_ref, bh_ref,
                 out_ref, *, A):
    x = x_ref[...]                                            # [Bt, S]

    # --- MLP trunk (MXU matmuls, f32 accumulate) ---
    h1 = jnp.maximum(
        jnp.dot(x, w1_ref[...], preferred_element_type=jnp.float32) + b1_ref[...],
        0.0)
    h2 = jnp.maximum(
        jnp.dot(h1, w2_ref[...], preferred_element_type=jnp.float32) + b2_ref[...],
        0.0)

    # --- fused policy head: one matmul for both mean and log_std ---
    head = jnp.dot(h2, wh_ref[...], preferred_element_type=jnp.float32) + bh_ref[...]
    mean = head[:, 0:A]
    log_std = jnp.clip(head[:, A:2 * A], LOG_STD_MIN, LOG_STD_MAX)

    action = jnp.tanh(mean)                                   # deterministic action

    # stable & exact tanh-Jacobian: log(1 - tanh(m)^2) = 2*(log2 - m - softplus(-2m))
    z = -2.0 * mean
    softplus = jnp.maximum(z, 0.0) + jnp.log1p(jnp.exp(-jnp.abs(z)))
    log_det = 2.0 * (LOG2 - mean - softplus)

    logp = -log_std - HALF_LOG_2PI - log_det                  # logN(mean|mean,std) - log|det|
    logp_sum = jnp.sum(logp, axis=-1, keepdims=True)          # [Bt, 1]

    # --- single fused store of the packed [action | logp] slab ---
    out_ref[...] = jnp.concatenate([action, logp_sum], axis=-1)


def prepare_params(params):
    """One-time param prep: fuse the mean/log_std head into single [H, 2A]/[1, 2A]."""
    (w1, b1, w2, b2, wm, bm, ws, bs) = params
    wh = jnp.concatenate([wm, ws], axis=1)     # [H, 2A]  (mean | log_std)
    bh = jnp.concatenate([bm, bs], axis=1)     # [1, 2A]
    return w1, w2, wh, b1, b2, bh


@partial(jax.jit, static_argnames=("S", "H", "A"))
def actor_forward(x, w1, w2, wh, b1, b2, bh, *, S, H, A):
    B = x.shape[0]
    out_w = A + 1                                             # [action | logp]

    # Few, large grid steps; >= 2 steps for mid-size batches so both v7x
    # TensorCores are fed.  Partial trailing block -> no batch padding copy.
    n_tiles = pl.cdiv(B, MAX_B_TILE)
    if n_tiles == 1 and B > 256:
        n_tiles = 2
    b_tile = min(_round_up(pl.cdiv(B, n_tiles), 8), MAX_B_TILE)
    grid = (pl.cdiv(B, b_tile),)

    cost = pl.CostEstimate(
        flops=2 * B * (S * H + H * H + H * 2 * A),
        transcendentals=B * A * 3,
        bytes_accessed=4 * (B * S + B * out_w
                            + w1.size + w2.size + wh.size
                            + b1.size + b2.size + bh.size),
    )

    packed = pl.pallas_call(
        partial(actor_kernel, A=A),
        out_shape=jax.ShapeDtypeStruct((B, out_w), jnp.float32),
        grid=grid,
        in_specs=[
            pl.BlockSpec((b_tile, S), lambda i: (i, 0)),      # state tile
            pl.BlockSpec((S, H), lambda i: (0, 0)),           # W1, resident
            pl.BlockSpec((H, H), lambda i: (0, 0)),           # W2, resident
            pl.BlockSpec((H, 2 * A), lambda i: (0, 0)),       # [Wm|Ws], resident
            pl.BlockSpec((1, H), lambda i: (0, 0)),           # b1
            pl.BlockSpec((1, H), lambda i: (0, 0)),           # b2
            pl.BlockSpec((1, 2 * A), lambda i: (0, 0)),       # [bm|bs]
        ],
        out_specs=pl.BlockSpec((b_tile, out_w), lambda i: (i, 0)),
        compiler_params=pltpu.CompilerParams(
            dimension_semantics=("parallel",)),
        cost_estimate=cost,
    )(x, w1, w2, wh, b1, b2, bh)

    action = packed[:, 0:A]
    log_prob = packed[:, A:A + 1]
    return action, log_prob


def init_params(key, state_dim, hidden_dim, action_dim):
    """Deterministic synthetic parameter init (PyTorch-style uniform fan-in)."""
    keys = jax.random.split(key, 8)

    def linear(kw, kb, fan_in, fan_out):
        bound = 1.0 / math.sqrt(fan_in)
        w = jax.random.uniform(kw, (fan_in, fan_out), jnp.float32, -bound, bound)
        b = jax.random.uniform(kb, (1, fan_out), jnp.float32, -bound, bound)
        return w, b

    w1, b1 = linear(keys[0], keys[1], state_dim, hidden_dim)
    w2, b2 = linear(keys[2], keys[3], hidden_dim, hidden_dim)
    wm, bm = linear(keys[4], keys[5], hidden_dim, action_dim)
    ws, bs = linear(keys[6], keys[7], hidden_dim, action_dim)
    return (w1, b1, w2, b2, wm, bm, ws, bs)


def reference_forward(x, params):
    """Pure-JAX reference for correctness checking (same stable formulation)."""
    (w1, b1, w2, b2, wm, bm, ws, bs) = params
    h1 = jnp.maximum(x @ w1 + b1, 0.0)
    h2 = jnp.maximum(h1 @ w2 + b2, 0.0)
    mean = h2 @ wm + bm
    log_std = jnp.clip(h2 @ ws + bs, LOG_STD_MIN, LOG_STD_MAX)
    action = jnp.tanh(mean)
    log_det = 2.0 * (LOG2 - mean - jax.nn.softplus(-2.0 * mean))
    logp = -log_std - HALF_LOG_2PI - log_det
    return action, jnp.sum(logp, axis=-1, keepdims=True)


if __name__ == "__main__":
    B, S, H, A = 8, 16, 32, 4  # batch, state_dim, hidden, action_dim

    key = jax.random.PRNGKey(0)
    k_state, k_params = jax.random.split(key)
    state = jax.random.normal(k_state, (B, S), jnp.float32)
    params = init_params(k_params, S, H, A)

    w1, w2, wh, b1, b2, bh = prepare_params(params)     # one-time head fusion
    action, log_prob = actor_forward(state, w1, w2, wh, b1, b2, bh, S=S, H=H, A=A)
    jax.block_until_ready((action, log_prob))

    ref_action, ref_log_prob = reference_forward(state, params)
    assert action.shape == (B, A) and log_prob.shape == (B, 1)
    assert jnp.allclose(action, ref_action, atol=1e-5, rtol=1e-5)
    assert jnp.allclose(log_prob, ref_log_prob, atol=1e-4, rtol=1e-4)

    print("KERNEL_OK")
</pallas_src>

<mosaic_0001>
module attributes {stable_mosaic.version = 11 : i64} {
  func.func @actor_kernel(%arg0: i32, %arg1: memref<8x16xf32, #tpu.memory_space<vmem>>, %arg2: memref<16x32xf32, #tpu.memory_space<vmem>>, %arg3: memref<32x32xf32, #tpu.memory_space<vmem>>, %arg4: memref<32x8xf32, #tpu.memory_space<vmem>>, %arg5: memref<1x32xf32, #tpu.memory_space<vmem>>, %arg6: memref<1x32xf32, #tpu.memory_space<vmem>>, %arg7: memref<1x8xf32, #tpu.memory_space<vmem>>, %arg8: memref<8x5xf32, #tpu.memory_space<vmem>>) attributes {dimension_semantics = [#tpu.dimension_semantics<parallel>], iteration_bounds = array<i64: 1>, scalar_prefetch = 0 : i64, scratch_operands = 0 : i64, tpu.core_type = #tpu.core_type<tc>, window_params = [{transform_indices = @transform_0, window_bounds = array<i64: 8, 16>}, {pipeline_mode = #tpu.pipeline_mode<synchronous>, transform_indices = @transform_1, window_bounds = array<i64: 16, 32>}, {pipeline_mode = #tpu.pipeline_mode<synchronous>, transform_indices = @transform_2, window_bounds = array<i64: 32, 32>}, {pipeline_mode = #tpu.pipeline_mode<synchronous>, transform_indices = @transform_3, window_bounds = array<i64: 32, 8>}, {pipeline_mode = #tpu.pipeline_mode<synchronous>, transform_indices = @transform_4, window_bounds = array<i64: 1, 32>}, {pipeline_mode = #tpu.pipeline_mode<synchronous>, transform_indices = @transform_5, window_bounds = array<i64: 1, 32>}, {pipeline_mode = #tpu.pipeline_mode<synchronous>, transform_indices = @transform_6, window_bounds = array<i64: 1, 8>}, {transform_indices = @transform_7, window_bounds = array<i64: 8, 5>}]} {
    %c0 = arith.constant 0 : index
    %c0_0 = arith.constant 0 : index
    %0 = vector.load %arg1[%c0, %c0_0] : memref<8x16xf32, #tpu.memory_space<vmem>>, vector<8x16xf32>
    %c0_1 = arith.constant 0 : index
    %c0_2 = arith.constant 0 : index
    %1 = vector.load %arg2[%c0_1, %c0_2] : memref<16x32xf32, #tpu.memory_space<vmem>>, vector<16x32xf32>
    %cst = arith.constant dense<0.000000e+00> : vector<8x32xf32>
    %2 = tpu.matmul %0, %1, %cst {dimension_numbers = #tpu.dot_dimension_numbers<[1], [0], [0], [1], [0, 0, 1, 1], [], []>} : vector<8x16xf32>, vector<16x32xf32>, vector<8x32xf32> -> vector<8x32xf32>
    %c0_3 = arith.constant 0 : index
    %c0_4 = arith.constant 0 : index
    %3 = vector.load %arg5[%c0_3, %c0_4] : memref<1x32xf32, #tpu.memory_space<vmem>>, vector<1x32xf32>
    %4 = vector.broadcast %3 : vector<1x32xf32> to vector<8x32xf32>
    %5 = arith.addf %2, %4 : vector<8x32xf32>
    %cst_5 = arith.constant 0.000000e+00 : f32
    %6 = vector.broadcast %cst_5 : f32 to vector<8x32xf32>
    %7 = arith.maximumf %5, %6 : vector<8x32xf32>
    %c0_6 = arith.constant 0 : index
    %c0_7 = arith.constant 0 : index
    %8 = vector.load %arg3[%c0_6, %c0_7] : memref<32x32xf32, #tpu.memory_space<vmem>>, vector<32x32xf32>
    %cst_8 = arith.constant dense<0.000000e+00> : vector<8x32xf32>
    %9 = tpu.matmul %7, %8, %cst_8 {dimension_numbers = #tpu.dot_dimension_numbers<[1], [0], [0], [1], [0, 0, 1, 1], [], []>} : vector<8x32xf32>, vector<32x32xf32>, vector<8x32xf32> -> vector<8x32xf32>
    %c0_9 = arith.constant 0 : index
    %c0_10 = arith.constant 0 : index
    %10 = vector.load %arg6[%c0_9, %c0_10] : memref<1x32xf32, #tpu.memory_space<vmem>>, vector<1x32xf32>
    %11 = vector.broadcast %10 : vector<1x32xf32> to vector<8x32xf32>
    %12 = arith.addf %9, %11 : vector<8x32xf32>
    %cst_11 = arith.constant 0.000000e+00 : f32
    %13 = vector.broadcast %cst_11 : f32 to vector<8x32xf32>
    %14 = arith.maximumf %12, %13 : vector<8x32xf32>
    %c0_12 = arith.constant 0 : index
    %c0_13 = arith.constant 0 : index
    %15 = vector.load %arg4[%c0_12, %c0_13] : memref<32x8xf32, #tpu.memory_space<vmem>>, vector<32x8xf32>
    %cst_14 = arith.constant dense<0.000000e+00> : vector<8x8xf32>
    %16 = tpu.matmul %14, %15, %cst_14 {dimension_numbers = #tpu.dot_dimension_numbers<[1], [0], [0], [1], [0, 0, 1, 1], [], []>} : vector<8x32xf32>, vector<32x8xf32>, vector<8x8xf32> -> vector<8x8xf32>
    %c0_15 = arith.constant 0 : index
    %c0_16 = arith.constant 0 : index
    %17 = vector.load %arg7[%c0_15, %c0_16] : memref<1x8xf32, #tpu.memory_space<vmem>>, vector<1x8xf32>
    %18 = vector.broadcast %17 : vector<1x8xf32> to vector<8x8xf32>
    %19 = arith.addf %16, %18 : vector<8x8xf32>
    %20 = vector.extract_strided_slice %19 {offsets = [0, 0], sizes = [8, 4], strides = [1, 1]} : vector<8x8xf32> to vector<8x4xf32>
    %21 = vector.extract_strided_slice %19 {offsets = [0, 4], sizes = [8, 4], strides = [1, 1]} : vector<8x8xf32> to vector<8x4xf32>
    %cst_17 = arith.constant -2.000000e+01 : f32
    %cst_18 = arith.constant 2.000000e+00 : f32
    %22 = vector.broadcast %cst_17 : f32 to vector<8x4xf32>
    %23 = arith.maximumf %22, %21 : vector<8x4xf32>
    %24 = vector.broadcast %cst_18 : f32 to vector<8x4xf32>
    %25 = arith.minimumf %24, %23 : vector<8x4xf32>
    %26 = math.tanh %20 : vector<8x4xf32>
    %cst_19 = arith.constant -2.000000e+00 : f32
    %27 = vector.broadcast %cst_19 : f32 to vector<8x4xf32>
    %28 = arith.mulf %27, %20 : vector<8x4xf32>
    %cst_20 = arith.constant 0.000000e+00 : f32
    %29 = vector.broadcast %cst_20 : f32 to vector<8x4xf32>
    %30 = arith.maximumf %28, %29 : vector<8x4xf32>
    %31 = math.absf %28 : vector<8x4xf32>
    %cst_21 = arith.constant 0.000000e+00 : f32
    %32 = vector.broadcast %cst_21 : f32 to vector<8x4xf32>
    %33 = arith.subf %32, %31 : vector<8x4xf32>
    %34 = math.exp %33 : vector<8x4xf32>
    %35 = math.log1p %34 : vector<8x4xf32>
    %36 = arith.addf %30, %35 : vector<8x4xf32>
    %cst_22 = arith.constant 0.693147182 : f32
    %37 = vector.broadcast %cst_22 : f32 to vector<8x4xf32>
    %38 = arith.subf %37, %20 : vector<8x4xf32>
    %39 = arith.subf %38, %36 : vector<8x4xf32>
    %cst_23 = arith.constant 2.000000e+00 : f32
    %40 = vector.broadcast %cst_23 : f32 to vector<8x4xf32>
    %41 = arith.mulf %40, %39 : vector<8x4xf32>
    %cst_24 = arith.constant 0.000000e+00 : f32
    %42 = vector.broadcast %cst_24 : f32 to vector<8x4xf32>
    %43 = arith.subf %42, %25 : vector<8x4xf32>
    %cst_25 = arith.constant 0.918938517 : f32
    %44 = vector.broadcast %cst_25 : f32 to vector<8x4xf32>
    %45 = arith.subf %43, %44 : vector<8x4xf32>
    %46 = arith.subf %45, %41 : vector<8x4xf32>
    %cst_26 = arith.constant dense<0.000000e+00> : vector<8xf32>
    %47 = vector.multi_reduction <add>, %46, %cst_26 [1] : vector<8x4xf32> to vector<8xf32>
    %48 = vector.shape_cast %47 : vector<8xf32> to vector<8x1xf32>
    %49 = tpu.concatenate %26, %48 in 1 : vector<8x4xf32>, vector<8x1xf32> -> vector<8x5xf32>
    %c0_27 = arith.constant 0 : index
    %c0_28 = arith.constant 0 : index
    %50 = vector.load %arg8[%c0_27, %c0_28] : memref<8x5xf32, #tpu.memory_space<vmem>>, vector<8x5xf32>
    tpu.vector_store %arg8[%c0_27, %c0_28], %49 {strides = array<i32>} : memref<8x5xf32, #tpu.memory_space<vmem>>, vector<8x5xf32>,
    return
  }
  func.func @transform_0(%arg0: i32) -> (i32, i32) {
    %c0_i32 = arith.constant 0 : i32
    %c0_i32_0 = arith.constant 0 : i32
    return %arg0, %c0_i32 : i32, i32
  }
  func.func @transform_1(%arg0: i32) -> (i32, i32) {
    %c0_i32 = arith.constant 0 : i32
    %c0_i32_0 = arith.constant 0 : i32
    %c0_i32_1 = arith.constant 0 : i32
    return %c0_i32, %c0_i32_0 : i32, i32
  }
  func.func @transform_2(%arg0: i32) -> (i32, i32) {
    %c0_i32 = arith.constant 0 : i32
    %c0_i32_0 = arith.constant 0 : i32
    %c0_i32_1 = arith.constant 0 : i32
    return %c0_i32, %c0_i32_0 : i32, i32
  }
  func.func @transform_3(%arg0: i32) -> (i32, i32) {
    %c0_i32 = arith.constant 0 : i32
    %c0_i32_0 = arith.constant 0 : i32
    %c0_i32_1 = arith.constant 0 : i32
    return %c0_i32, %c0_i32_0 : i32, i32
  }
  func.func @transform_4(%arg0: i32) -> (i32, i32) {
    %c0_i32 = arith.constant 0 : i32
    %c0_i32_0 = arith.constant 0 : i32
    %c0_i32_1 = arith.constant 0 : i32
    return %c0_i32, %c0_i32_0 : i32, i32
  }
  func.func @transform_5(%arg0: i32) -> (i32, i32) {
    %c0_i32 = arith.constant 0 : i32
    %c0_i32_0 = arith.constant 0 : i32
    %c0_i32_1 = arith.constant 0 : i32
    return %c0_i32, %c0_i32_0 : i32, i32
  }
  func.func @transform_6(%arg0: i32) -> (i32, i32) {
    %c0_i32 = arith.constant 0 : i32
    %c0_i32_0 = arith.constant 0 : i32
    %c0_i32_1 = arith.constant 0 : i32
    return %c0_i32, %c0_i32_0 : i32, i32
  }
  func.func @transform_7(%arg0: i32) -> (i32, i32) {
    %c0_i32 = arith.constant 0 : i32
    %c0_i32_0 = arith.constant 0 : i32
    return %arg0, %c0_i32 : i32, i32
  }
}

</mosaic_0001>

<llo_original>
// kernel: actor_forward.1
$region0: #{actor_forward.1}
  #allocation0 [shape = 'u32[]', space=smem, size = 0x4, offset = 0x4, fixed_abs, tag = 'smem constant byte address 0x4 - core index']
  #allocation1 [shape = 'u32[144,128]{1,0:T(1,128)}', space=vmem, size = 0x12000, scoped, tag = 'internal scratch']
  %s0 = inlined_call_operand.vmem [shape: f32[8,16], index: 0, kind: input, shape index: {}]
  %s1 = inlined_call_operand.hbm [shape: f32[16,32], index: 1, kind: input, shape index: {}]
  %s2 = inlined_call_operand.vmem [shape: f32[32,32], index: 2, kind: input, shape index: {}]
  %s3 = inlined_call_operand.vmem [shape: f32[32,8], index: 3, kind: input, shape index: {}]
  %s4 = inlined_call_operand.vmem [shape: f32[1,32], index: 4, kind: input, shape index: {}]
  %s5 = inlined_call_operand.vmem [shape: f32[1,32], index: 5, kind: input, shape index: {}]
  %s6 = inlined_call_operand.vmem [shape: f32[1,8], index: 6, kind: input, shape index: {}]
  %s7 = inlined_call_operand.vmem [shape: f32[8,5], index: 7, kind: output, shape index: {}]
  %s8 = sld [smem:[#allocation0]]
  $region42: #{actor_forward.1} parent=0
    _
  %s10 = ssub.s32 1, %s8
  %s11 = scalar_select 0, %s10, %s8
  $region1: #{actor_forward.1} parent=0
    #allocation2 [shape = 'u8[8192]{0}', space=vmem, size = 0x2000, scoped, tag = 'input window, operand 1, single buffered']
    #allocation3 [shape = 's32[1]{0}', space=sflag, size = 0x4, scoped, tag = 'scoped memory for actor_forward.1']
    %12 = vsyncpa [#allocation3], 0
    // Predicated region
    $region2: #{actor_forward.1} parent=1 // pred_check
      _
    $region3: #{actor_forward.1} parent=1 // pred_check_branch
      %14 = sbr.rel (0) target = $region5
    $region4: #{actor_forward.1} parent=1 // pred_region
      _
    $region5: #{actor_forward.1} parent=1 // pred_fallthru
      _
    // Predicated region
    $region6: #{actor_forward.1} parent=1 // pred_check
      _
    $region7: #{actor_forward.1} parent=1 // pred_check_branch
      %16 = sbr.rel (0) target = $region9
    $region8: #{actor_forward.1} parent=1 // pred_region
      %s18 = ssub.s32 256, 256
      %19 = vsyncadd [#allocation3], %s18
      %s20 = sshll.u32 [#allocation2], 4
      %s21 = int_to_ptr.vmem [resolvable:$true] %s20
      %26 = dma.hbm_to_vmem [thread:$0]  %s1, 256, %s21, [#allocation3], 128, 128, 8
    $region9: #{actor_forward.1} parent=1 // pred_fallthru
      _
    // Predicated region
    $region10: #{actor_forward.1} parent=1 // pred_check
      _
    $region11: #{actor_forward.1} parent=1 // pred_check_branch
      %28 = sbr.rel (0) target = $region13
    $region12: #{actor_forward.1} parent=1 // pred_region
      _
    $region13: #{actor_forward.1} parent=1 // pred_fallthru
      _
    // Predicated region
    $region14: #{actor_forward.1} parent=1 // pred_check
      _
    $region15: #{actor_forward.1} parent=1 // pred_check_branch
      %30 = sbr.rel (0) target = $region17
    $region16: #{actor_forward.1} parent=1 // pred_region
      _
    $region17: #{actor_forward.1} parent=1 // pred_fallthru
      _
    // Predicated region
    $region18: #{actor_forward.1} parent=1 // pred_check
      _
    $region19: #{actor_forward.1} parent=1 // pred_check_branch
      %32 = sbr.rel (0) target = $region21
    $region20: #{actor_forward.1} parent=1 // pred_region
      _
    $region21: #{actor_forward.1} parent=1 // pred_fallthru
      _
    // Predicated region
    $region22: #{actor_forward.1} parent=1 // pred_check
      _
    $region23: #{actor_forward.1} parent=1 // pred_check_branch
      %34 = sbr.rel (0) target = $region25
    $region24: #{actor_forward.1} parent=1 // pred_region
      _
    $region25: #{actor_forward.1} parent=1 // pred_fallthru
      _
    // Predicated region
    $region26: #{actor_forward.1} parent=1 // pred_check
      _
    $region27: #{actor_forward.1} parent=1 // pred_check_branch
      %36 = sbr.rel (0) target = $region29
    $region28: #{actor_forward.1} parent=1 // pred_region
      _
    $region29: #{actor_forward.1} parent=1 // pred_fallthru
      _
    // Predicated region
    $region30: #{actor_forward.1} parent=1 // pred_check
      _
    $region31: #{actor_forward.1} parent=1 // pred_check_branch
      %38 = sbr.rel (0) target = $region33
    $region32: #{actor_forward.1} parent=1 // pred_region
      %39 = dma.done [#allocation3], 256
    $region33: #{actor_forward.1} parent=1 // pred_fallthru
      _
    %v40 = vld [vmem:[%s0] sm:$0xff]
    %v41 = vld [vmem:[#allocation2] sm:$0xff]
    %v42 = vld [vmem:[#allocation2 + $0x8] sm:$0xff]
    %v43 = vld [vmem:[%s4] sm:$0x1]
    %v45 = vlaneseq
    %v46 = vshrl.u32 %v45, 7
    %v47 = vsub.s32 0, %v46
    %v48 = vrot.slane %v43, %v47
    %vm50 = vcmask 130048
    %v52 = vsel %vm50, %v40, 0
    %54 = vmatprep.subr.mxu0 0.0
    %55 = vmatpush1.msra.mxu0 0.0
    %56 = vmatprep.subr.mxu0 0.0
    %57 = vmatpush1.msra.mxu0 0.0
    %58 = vmatprep.subr.mxu0 0.0
    %59 = vmatpush1.msra.mxu0 0.0
    %60 = vmatprep.subr.mxu0 0.0
    %61 = vmatpush1.msra.mxu0 0.0
    %62 = vmatprep.subr.mxu0 0.0
    %63 = vmatpush1.msra.mxu0 0.0
    %64 = vmatprep.subr.mxu0 0.0
    %65 = vmatpush1.msra.mxu0 0.0
    %66 = vmatprep.subr.mxu0 0.0
    %67 = vmatpush1.msra.mxu0 0.0
    %68 = vmatprep.subr.mxu0 0.0
    %69 = vmatpush1.msra.mxu0 0.0
    %70 = vmatprep.subr.mxu0 0.0
    %71 = vmatpush1.msra.mxu0 0.0
    %72 = vmatprep.subr.mxu0 0.0
    %73 = vmatpush1.msra.mxu0 0.0
    %74 = vmatprep.subr.mxu0 0.0
    %75 = vmatpush1.msra.mxu0 0.0
    %76 = vmatprep.subr.mxu0 0.0
    %77 = vmatpush1.msra.mxu0 0.0
    %78 = vmatprep.subr.mxu0 0.0
    %79 = vmatpush1.msra.mxu0 0.0
    %80 = vmatprep.subr.mxu0 0.0
    %81 = vmatpush1.msra.mxu0 0.0
    %82 = vmatprep.subr.mxu0 0.0
    %83 = vmatpush1.msra.mxu0 %v42
    %84 = vmatprep.subr.mxu0 0.0
    %85 = vmatpush1.msra.mxu0 %v41
    %86 = vmatprep.subr.mxu0 0.0
    %87 = vmatpush2.msra.mxu0 0.0
    %88 = vmatprep.subr.mxu0 0.0
    %89 = vmatpush2.msra.mxu0 0.0
    %90 = vmatprep.subr.mxu0 0.0
    %91 = vmatpush2.msra.mxu0 0.0
    %92 = vmatprep.subr.mxu0 0.0
    %93 = vmatpush2.msra.mxu0 0.0
    %94 = vmatprep.subr.mxu0 0.0
    %95 = vmatpush2.msra.mxu0 0.0
    %96 = vmatprep.subr.mxu0 0.0
    %97 = vmatpush2.msra.mxu0 0.0
    %98 = vmatprep.subr.mxu0 0.0
    %99 = vmatpush2.msra.mxu0 0.0
    %100 = vmatprep.subr.mxu0 0.0
    %101 = vmatpush2.msra.mxu0 0.0
    %102 = vmatprep.subr.mxu0 0.0
    %103 = vmatpush2.msra.mxu0 0.0
    %104 = vmatprep.subr.mxu0 0.0
    %105 = vmatpush2.msra.mxu0 0.0
    %106 = vmatprep.subr.mxu0 0.0
    %107 = vmatpush2.msra.mxu0 0.0
    %108 = vmatprep.subr.mxu0 0.0
    %109 = vmatpush2.msra.mxu0 0.0
    %110 = vmatprep.subr.mxu0 0.0
    %111 = vmatpush2.msra.mxu0 0.0
    %112 = vmatprep.subr.mxu0 0.0
    %113 = vmatpush2.msra.mxu0 0.0
    %114 = vmatprep.subr.mxu0 0.0
    %115 = vmatpush2.msra.mxu0 0.0
    %116 = vmatprep.subr.mxu0 0.0
    %117 = vmatpush2.msra.mxu0 0.0
    %118 = vmatprep.mubr.f32.mxu0 0.0
    %119 = vmatmul.mubr.f32.gmra.mxu0 %v52
    %v120 = vpop.f32.mrf.mxu0
    %v121 = vadd.f32 %v48, %v120
    %v122 = vpop.f32.mrf.mxu0
    %123 = vdwg.mxu0
    %v124 = vmax.f32 %v121, 0.0
    %v125 = vld [vmem:[%s2] sm:$0xff]
    %v126 = vld [vmem:[%s2 + $0x8] sm:$0xff]
    %v127 = vld [vmem:[%s2 + $0x10] sm:$0xff]
    %v128 = vld [vmem:[%s2 + $0x18] sm:$0xff]
    %v129 = vld [vmem:[%s5] sm:$0x1]
    %v131 = vlaneseq
    %v132 = vshrl.u32 %v131, 7
    %v133 = vsub.s32 0, %v132
    %v134 = vrot.slane %v129, %v133
    %vm136 = vcmask 261120
    %v138 = vsel %vm136, %v124, 0
    %140 = vmatprep.subr.mxu0 0.0
    %141 = vmatpush1.msra.mxu0 0.0
    %142 = vmatprep.subr.mxu0 0.0
    %143 = vmatpush1.msra.mxu0 0.0
    %144 = vmatprep.subr.mxu0 0.0
    %145 = vmatpush1.msra.mxu0 0.0
    %146 = vmatprep.subr.mxu0 0.0
    %147 = vmatpush1.msra.mxu0 0.0
    %148 = vmatprep.subr.mxu0 0.0
    %149 = vmatpush1.msra.mxu0 0.0
    %150 = vmatprep.subr.mxu0 0.0
    %151 = vmatpush1.msra.mxu0 0.0
    %152 = vmatprep.subr.mxu0 0.0
    %153 = vmatpush1.msra.mxu0 0.0
    %154 = vmatprep.subr.mxu0 0.0
    %155 = vmatpush1.msra.mxu0 0.0
    %156 = vmatprep.subr.mxu0 0.0
    %157 = vmatpush1.msra.mxu0 0.0
    %158 = vmatprep.subr.mxu0 0.0
    %159 = vmatpush1.msra.mxu0 0.0
    %160 = vmatprep.subr.mxu0 0.0
    %161 = vmatpush1.msra.mxu0 0.0
    %162 = vmatprep.subr.mxu0 0.0
    %163 = vmatpush1.msra.mxu0 0.0
    %164 = vmatprep.subr.mxu0 0.0
    %165 = vmatpush1.msra.mxu0 %v128
    %166 = vmatprep.subr.mxu0 0.0
    %167 = vmatpush1.msra.mxu0 %v127
    %168 = vmatprep.subr.mxu0 0.0
    %169 = vmatpush1.msra.mxu0 %v126
    %170 = vmatprep.subr.mxu0 0.0
    %171 = vmatpush1.msra.mxu0 %v125
    %172 = vmatprep.subr.mxu0 0.0
    %173 = vmatpush2.msra.mxu0 0.0
    %174 = vmatprep.subr.mxu0 0.0
    %175 = vmatpush2.msra.mxu0 0.0
    %176 = vmatprep.subr.mxu0 0.0
    %177 = vmatpush2.msra.mxu0 0.0
    %178 = vmatprep.subr.mxu0 0.0
    %179 = vmatpush2.msra.mxu0 0.0
    %180 = vmatprep.subr.mxu0 0.0
    %181 = vmatpush2.msra.mxu0 0.0
    %182 = vmatprep.subr.mxu0 0.0
    %183 = vmatpush2.msra.mxu0 0.0
    %184 = vmatprep.subr.mxu0 0.0
    %185 = vmatpush2.msra.mxu0 0.0
    %186 = vmatprep.subr.mxu0 0.0
    %187 = vmatpush2.msra.mxu0 0.0
    %188 = vmatprep.subr.mxu0 0.0
    %189 = vmatpush2.msra.mxu0 0.0
    %190 = vmatprep.subr.mxu0 0.0
    %191 = vmatpush2.msra.mxu0 0.0
    %192 = vmatprep.subr.mxu0 0.0
    %193 = vmatpush2.msra.mxu0 0.0
    %194 = vmatprep.subr.mxu0 0.0
    %195 = vmatpush2.msra.mxu0 0.0
    %196 = vmatprep.subr.mxu0 0.0
    %197 = vmatpush2.msra.mxu0 0.0
    %198 = vmatprep.subr.mxu0 0.0
    %199 = vmatpush2.msra.mxu0 0.0
    %200 = vmatprep.subr.mxu0 0.0
    %201 = vmatpush2.msra.mxu0 0.0
    %202 = vmatprep.subr.mxu0 0.0
    %203 = vmatpush2.msra.mxu0 0.0
    %204 = vmatprep.mubr.f32.mxu0 0.0
    %205 = vmatmul.mubr.f32.gmra.mxu0 %v138
    %v206 = vpop.f32.mrf.mxu0
    %v207 = vadd.f32 %v134, %v206
    %v208 = vpop.f32.mrf.mxu0
    %209 = vdwg.mxu0
    %v210 = vmax.f32 %v207, 0.0
    %v211 = vld [vmem:[%s3] sm:$0xff]
    %v212 = vld [vmem:[%s3 + $0x8] sm:$0xff]
    %v213 = vld [vmem:[%s3 + $0x10] sm:$0xff]
    %v214 = vld [vmem:[%s3 + $0x18] sm:$0xff]
    %v215 = vld [vmem:[%s6] sm:$0x1]
    %v217 = vlaneseq
    %v218 = vshrl.u32 %v217, 7
    %v219 = vsub.s32 0, %v218
    %v220 = vrot.slane %v215, %v219
    %v223 = vsel %vm136, %v210, 0
    %225 = vmatprep.subr.mxu0 0.0
    %226 = vmatpush1.msra.mxu0 0.0
    %227 = vmatprep.subr.mxu0 0.0
    %228 = vmatpush1.msra.mxu0 0.0
    %229 = vmatprep.subr.mxu0 0.0
    %230 = vmatpush1.msra.mxu0 0.0
    %231 = vmatprep.subr.mxu0 0.0
    %232 = vmatpush1.msra.mxu0 0.0
    %233 = vmatprep.subr.mxu0 0.0
    %234 = vmatpush1.msra.mxu0 0.0
    %235 = vmatprep.subr.mxu0 0.0
    %236 = vmatpush1.msra.mxu0 0.0
    %237 = vmatprep.subr.mxu0 0.0
    %238 = vmatpush1.msra.mxu0 0.0
    %239 = vmatprep.subr.mxu0 0.0
    %240 = vmatpush1.msra.mxu0 0.0
    %241 = vmatprep.subr.mxu0 0.0
    %242 = vmatpush1.msra.mxu0 0.0
    %243 = vmatprep.subr.mxu0 0.0
    %244 = vmatpush1.msra.mxu0 0.0
    %245 = vmatprep.subr.mxu0 0.0
    %246 = vmatpush1.msra.mxu0 0.0
    %247 = vmatprep.subr.mxu0 0.0
    %248 = vmatpush1.msra.mxu0 0.0
    %249 = vmatprep.subr.mxu0 0.0
    %250 = vmatpush1.msra.mxu0 %v214
    %251 = vmatprep.subr.mxu0 0.0
    %252 = vmatpush1.msra.mxu0 %v213
    %253 = vmatprep.subr.mxu0 0.0
    %254 = vmatpush1.msra.mxu0 %v212
    %255 = vmatprep.subr.mxu0 0.0
    %256 = vmatpush1.msra.mxu0 %v211
    %257 = vmatprep.subr.mxu0 0.0
    %258 = vmatpush2.msra.mxu0 0.0
    %259 = vmatprep.subr.mxu0 0.0
    %260 = vmatpush2.msra.mxu0 0.0
    %261 = vmatprep.subr.mxu0 0.0
    %262 = vmatpush2.msra.mxu0 0.0
    %263 = vmatprep.subr.mxu0 0.0
    %264 = vmatpush2.msra.mxu0 0.0
    %265 = vmatprep.subr.mxu0 0.0
    %266 = vmatpush2.msra.mxu0 0.0
    %267 = vmatprep.subr.mxu0 0.0
    %268 = vmatpush2.msra.mxu0 0.0
    %269 = vmatprep.subr.mxu0 0.0
    %270 = vmatpush2.msra.mxu0 0.0
    %271 = vmatprep.subr.mxu0 0.0
    %272 = vmatpush2.msra.mxu0 0.0
    %273 = vmatprep.subr.mxu0 0.0
    %274 = vmatpush2.msra.mxu0 0.0
    %275 = vmatprep.subr.mxu0 0.0
    %276 = vmatpush2.msra.mxu0 0.0
    %277 = vmatprep.subr.mxu0 0.0
    %278 = vmatpush2.msra.mxu0 0.0
    %279 = vmatprep.subr.mxu0 0.0
    %280 = vmatpush2.msra.mxu0 0.0
    %281 = vmatprep.subr.mxu0 0.0
    %282 = vmatpush2.msra.mxu0 0.0
    %283 = vmatprep.subr.mxu0 0.0
    %284 = vmatpush2.msra.mxu0 0.0
    %285 = vmatprep.subr.mxu0 0.0
    %286 = vmatpush2.msra.mxu0 0.0
    %287 = vmatprep.subr.mxu0 0.0
    %288 = vmatpush2.msra.mxu0 0.0
    %289 = vmatprep.mubr.f32.mxu0 0.0
    %290 = vmatmul.mubr.f32.gmra.mxu0 %v223
    %v291 = vpop.f32.mrf.mxu0
    %v292 = vadd.f32 %v220, %v291
    %v293 = vpop.f32.mrf.mxu0
    %294 = vdwg.mxu0
    %v295 = vmax.f32 %v292, -20.0
    %v296 = vmin.f32 %v295, 2.0
    %v297 = vtanh.pop %v292
    %v298 = vmul.f32 %v292, -2.0
    %v299 = vmax.f32 %v298, 0.0
    %v300 = vand.u32 2147483647, %v298
    %v301 = vsub.f32 0.0, %v300
    %v302 = vmul.f32 %v301, 1.442695
    %v303 = vpow.pop %v302
    %v304 = vadd.f32 %v303, 1.0
    %v305 = vlog2.pop %v304
    %v306 = vmul.f32 %v305, 0.6931472
    %v307 = vmul.f32 -0.5, %v303
    %v308 = vadd.f32 %v307, 1.0
    %v309 = vmul.f32 %v308, %v303
    %v310 = vand.u32 2147483647, %v303
    %vm311 = vcmp.lt.f32.partialorder %v310, 0.0004427343
    %v312 = vsel %vm311, %v309, %v306
    %v313 = vadd.f32 %v299, %v312
    %v314 = vsub.f32 0.6931472, %v292
    %v315 = vsub.f32 %v314, %v313
    %v316 = vmul.f32 %v315, 2.0
    %v317 = vsub.f32 0.0, %v296
    %v318 = vsub.f32 %v317, 0.9189385
    %320 = vrot.lane.b32.xlu0 %v316, 4
    %v321 = vpop.permute.xlu0 %320
    %v323 = vsub.f32 %v318, %v321
    %325 = vrot.lane.b32.xlu0 %v323, 124
    %v326 = vpop.permute.xlu0 %325
    %vm328 = vcmask 31744
    %v329 = vsel %vm328, %v326, 0.0
    %330 = vadd.xlane.f32.xlu0 %v329
    %v331 = vpop.xlane.xlu0 %330
    %v332 = vsel %vm328, %v297, %v331
    %vm333 = vcmask 39936
    %334 = vst.msk [vmem:[%s7] sm:$0xff] %vm333, %v332
    // Predicated region
    $region34: #{actor_forward.1} parent=1 // pred_check
      _
    $region35: #{actor_forward.1} parent=1 // pred_check_branch
      %336 = sbr.rel (0) target = $region37
    $region36: #{actor_forward.1} parent=1 // pred_region
      _
    $region37: #{actor_forward.1} parent=1 // pred_fallthru
      _
    // Predicated region
    $region38: #{actor_forward.1} parent=1 // pred_check
      _
    $region39: #{actor_forward.1} parent=1 // pred_check_branch
      %338 = sbr.rel (0) target = $region41
    $region40: #{actor_forward.1} parent=1 // pred_region
      _
    $region41: #{actor_forward.1} parent=1 // pred_fallthru
      _
    %339 = vsyncpa [#allocation3], 1

</llo_original>
